<compile_context>
chip_gen: v7x
topology: tpu7x:2x2x1
jax: 0.10.0
libtpu: 0.0.40
codegen_flags: <defaults>
</compile_context>

<pallas_src>
import jax
import jax.numpy as jnp
from jax.experimental import pallas as pl
from jax.experimental.pallas import tpu as pltpu

NR_HIDDEN_UNITS = 64   # MLP.nr_hidden_units
LANES = 128            # TPU lane width
MAX_TILE_B = 2048      # upper bound on batch tile rows
NEG_BIG = -1e30        # large finite negative for the softmax lane mask


def _round_up(x, m):
    return (x + m - 1) // m * m


def _elu(x):
    # ELU(alpha=1): x if x > 0 else exp(x) - 1
    return jnp.where(x > 0, x, jnp.exp(x) - 1.0)


def ppo_kernel(x_ref, w1_ref, b1_ref, w2_ref, b2_ref, wh_ref, bh_ref,
               negbias_ref, vmask_ref, out_ref):
    # Backbone: two bf16 MXU matmuls with f32 accumulation; activations in f32.
    h = jnp.dot(x_ref[...], w1_ref[...], preferred_element_type=jnp.float32)
    h = _elu(h + b1_ref[...])
    h = jnp.dot(h.astype(jnp.bfloat16), w2_ref[...],
                preferred_element_type=jnp.float32)
    h = _elu(h + b2_ref[...])

    # Fused action+value head (f32): lanes [0, A) action logits, lane A value,
    # remaining lanes zero.  One MXU pass + one lane-dense [TB, 128] store.
    head = jnp.dot(h, wh_ref[...], preferred_element_type=jnp.float32) + bh_ref[...]

    # Softmax over action lanes via a precomputed additive bias row
    # (0 on action lanes, -1e30 elsewhere): exp underflows to exactly 0 on
    # masked lanes, so no per-element iota / compares / selects are needed.
    logits = head + negbias_ref[...]
    m = jnp.max(logits, axis=-1, keepdims=True)
    e = jnp.exp(logits - m)
    s = jnp.sum(e, axis=-1, keepdims=True)
    probs = e / s                       # exact normalization: sum(probs) == 1

    # probs is 0 on lane A (masked out of the softmax), so adding the value
    # through a (1,128) lane mask composes the final lane-dense output.
    out_ref[...] = probs + head * vmask_ref[...]


def ppo_forward(x, params, tile_b=None):
    """x: [B, history, *input_shape]. Returns (probs [B, A], value [B, 1])."""
    B = x.shape[0]
    x_flat = x.reshape(B, -1).astype(jnp.float32)
    F = x_flat.shape[1]

    w1, b1, w2, b2, wa, ba, wv, bv = params
    H = w1.shape[1]
    A = wa.shape[1]
    assert A + 1 <= LANES, "fused head assumes nr_actions + 1 <= 128"

    H_pad = _round_up(H, LANES)

    # Batch: pad only to a sublane multiple (8). Partial last tiles are handled
    # by the grid; we never over-pad the batch to a full tile.
    B8 = _round_up(B, 8)

    if tile_b is None:
        if B8 <= 256:
            tile_b = B8                                   # one step, no split
        else:
            # Even number of grid steps so both v7x TensorCores get work.
            n_steps = 2 * pl.cdiv(B8, 2 * MAX_TILE_B)
            tile_b = min(MAX_TILE_B, _round_up(pl.cdiv(B8, n_steps), 16))
    tile_b = max(8, min(_round_up(tile_b, 8), B8))

    # VMEM guard (v7x has the smallest VMEM): x (bf16) and out (f32) tiles are
    # double-buffered; weights are VMEM-resident once.
    weight_bytes = ((F * H_pad + H_pad * H_pad) * 2        # bf16 W1, W2
                    + (H_pad * LANES) * 4                  # f32 fused head
                    + 6 * LANES * 4)                       # bias / mask rows

    def _tile_bytes(tb):
        return 2 * tb * F * 2 + 2 * tb * LANES * 4

    vmem_budget = 24 * 1024 * 1024
    while tile_b > 8 and _tile_bytes(tile_b) + weight_bytes > vmem_budget:
        tile_b = max(8, _round_up(tile_b // 2, 8))

    grid = (pl.cdiv(B8, tile_b),)

    # x keeps its un-padded feature dim (a BlockSpec dim equal to the full array
    # dim is legal); only the weights get lane/sublane zero padding.
    x_b = x_flat.astype(jnp.bfloat16)
    if B8 != B:
        x_b = jnp.zeros((B8, F), jnp.bfloat16).at[:B].set(x_b)

    w1_p = jnp.zeros((F, H_pad), jnp.bfloat16).at[:, :H].set(w1.astype(jnp.bfloat16))
    b1_p = jnp.zeros((1, H_pad), jnp.float32).at[:, :H].set(b1)
    w2_p = jnp.zeros((H_pad, H_pad), jnp.bfloat16).at[:H, :H].set(w2.astype(jnp.bfloat16))
    b2_p = jnp.zeros((1, H_pad), jnp.float32).at[:, :H].set(b2)
    # Fused head (kept f32 for value accuracy): cols [0, A) actions, col A value.
    wh_p = (jnp.zeros((H_pad, LANES), jnp.float32)
            .at[:H, :A].set(wa).at[:H, A:A + 1].set(wv))
    bh_p = (jnp.zeros((1, LANES), jnp.float32)
            .at[:, :A].set(ba).at[:, A:A + 1].set(bv))

    lane = jnp.arange(LANES)
    negbias = jnp.where(lane < A, 0.0, NEG_BIG).astype(jnp.float32).reshape(1, LANES)
    vmask = (lane == A).astype(jnp.float32).reshape(1, LANES)

    def full_block(a):
        return pl.BlockSpec(a.shape, lambda i: (0,) * a.ndim)

    in_specs = [
        pl.BlockSpec((tile_b, F), lambda i: (i, 0)),   # x: batch-tiled, F un-padded
        full_block(w1_p), full_block(b1_p),
        full_block(w2_p), full_block(b2_p),
        full_block(wh_p), full_block(bh_p),
        full_block(negbias), full_block(vmask),
    ]
    out_specs = pl.BlockSpec((tile_b, LANES), lambda i: (i, 0))

    vmem_limit = int(min(64 * 1024 * 1024,
                         max(16 * 1024 * 1024,
                             2 * (_tile_bytes(tile_b) + weight_bytes))))

    out = pl.pallas_call(
        ppo_kernel,
        out_shape=jax.ShapeDtypeStruct((B8, LANES), jnp.float32),
        grid=grid,
        in_specs=in_specs,
        out_specs=out_specs,
        compiler_params=pltpu.CompilerParams(
            dimension_semantics=("parallel",),
            vmem_limit_bytes=vmem_limit),
    )(x_b, w1_p, b1_p, w2_p, b2_p, wh_p, bh_p, negbias, vmask)

    probs = out[:B, :A]
    value = out[:B, A:A + 1]
    return probs, value


def init_params(key, nr_input_features, nr_actions, hidden=NR_HIDDEN_UNITS):
    ks = jax.random.split(key, 8)
    scale = 0.1
    w1 = scale * jax.random.normal(ks[0], (nr_input_features, hidden), jnp.float32)
    b1 = scale * jax.random.normal(ks[1], (1, hidden), jnp.float32)
    w2 = scale * jax.random.normal(ks[2], (hidden, hidden), jnp.float32)
    b2 = scale * jax.random.normal(ks[3], (1, hidden), jnp.float32)
    wa = scale * jax.random.normal(ks[4], (hidden, nr_actions), jnp.float32)
    ba = scale * jax.random.normal(ks[5], (1, nr_actions), jnp.float32)
    wv = scale * jax.random.normal(ks[6], (hidden, 1), jnp.float32)
    bv = scale * jax.random.normal(ks[7], (1, 1), jnp.float32)
    return (w1, b1, w2, b2, wa, ba, wv, bv)


def reference_forward(x, params):
    """Pure-f32 reference matching the PyTorch module."""
    B = x.shape[0]
    xf = x.reshape(B, -1).astype(jnp.float32)
    w1, b1, w2, b2, wa, ba, wv, bv = params
    h = _elu(xf @ w1 + b1)
    h = _elu(h @ w2 + b2)
    probs = jax.nn.softmax(h @ wa + ba, axis=-1)
    value = h @ wv + bv
    return probs, value


def reference_forward_mixed(x, params):
    """Reference matching the kernel's precision (bf16 backbone, f32 head)."""
    B = x.shape[0]
    xf = x.reshape(B, -1).astype(jnp.float32)
    w1, b1, w2, b2, wa, ba, wv, bv = params
    h = jnp.dot(xf.astype(jnp.bfloat16), w1.astype(jnp.bfloat16),
                preferred_element_type=jnp.float32)
    h = _elu(h + b1)
    h = jnp.dot(h.astype(jnp.bfloat16), w2.astype(jnp.bfloat16),
                preferred_element_type=jnp.float32)
    h = _elu(h + b2)
    probs = jax.nn.softmax(h @ wa + ba, axis=-1)
    value = h @ wv + bv
    return probs, value


def _check(x, params, nr_actions, tile_b=None):
    probs, value = ppo_forward(x, params, tile_b=tile_b)
    probs = jax.block_until_ready(probs)
    value = jax.block_until_ready(value)

    # Tight check against a reference that mirrors the kernel's precision.
    mp, mv = reference_forward_mixed(x, params)
    assert jnp.allclose(probs, mp, atol=2e-3, rtol=2e-3)
    assert jnp.allclose(value, mv, atol=2e-3, rtol=2e-3)

    # Looser check against the pure-f32 module semantics (bf16 backbone error).
    fp, fv = reference_forward(x, params)
    assert jnp.allclose(probs, fp, atol=2e-2, rtol=2e-2)
    assert jnp.allclose(value, fv, atol=2e-2, rtol=2e-2)

    # Softmax normalization is exact now (plain divide, no approx reciprocal).
    assert jnp.allclose(jnp.sum(probs, axis=-1), 1.0, atol=1e-4)
    assert probs.shape == (x.shape[0], nr_actions) and value.shape == (x.shape[0], 1)


if __name__ == "__main__":
    # Module-consistent shapes:
    #   input_shape = (4, 4), max_history_length = 2 -> flattened features F = 32
    #   nr_actions = 5, batch = 2, hidden = 64
    batch = 2
    input_shape = (4, 4)
    max_history_length = 2
    nr_actions = 5
    nr_input_features = max_history_length * input_shape[0] * input_shape[1]

    key = jax.random.PRNGKey(0)
    kx, kp, kx2 = jax.random.split(key, 3)
    x = jax.random.normal(kx, (batch, max_history_length) + input_shape, jnp.float32)
    params = init_params(kp, nr_input_features, nr_actions)

    # Small run (single grid step, batch padded 2 -> 8 rows).
    _check(x, params, nr_actions)

    # Larger batch exercising the batch-tiled grid with a partial last tile
    # (80 rows, tile_b=32 -> 3 grid steps: 32 + 32 + 16).
    x_big = jax.random.normal(kx2, (80, max_history_length) + input_shape, jnp.float32)
    _check(x_big, params, nr_actions, tile_b=32)

    print("KERNEL_OK")
</pallas_src>

<mosaic_0001>
module attributes {stable_mosaic.version = 11 : i64} {
  func.func @ppo_kernel(%arg0: i32, %arg1: memref<8x32xbf16, #tpu.memory_space<vmem>>, %arg2: memref<32x128xbf16, #tpu.memory_space<vmem>>, %arg3: memref<1x128xf32, #tpu.memory_space<vmem>>, %arg4: memref<128x128xbf16, #tpu.memory_space<vmem>>, %arg5: memref<1x128xf32, #tpu.memory_space<vmem>>, %arg6: memref<128x128xf32, #tpu.memory_space<vmem>>, %arg7: memref<1x128xf32, #tpu.memory_space<vmem>>, %arg8: memref<1x128xf32, #tpu.memory_space<vmem>>, %arg9: memref<1x128xf32, #tpu.memory_space<vmem>>, %arg10: memref<8x128xf32, #tpu.memory_space<vmem>>) attributes {dimension_semantics = [#tpu.dimension_semantics<parallel>], iteration_bounds = array<i64: 1>, scalar_prefetch = 0 : i64, scratch_operands = 0 : i64, tpu.core_type = #tpu.core_type<tc>, window_params = [{transform_indices = @transform_0, window_bounds = array<i64: 8, 32>}, {pipeline_mode = #tpu.pipeline_mode<synchronous>, transform_indices = @transform_1, window_bounds = array<i64: 32, 128>}, {pipeline_mode = #tpu.pipeline_mode<synchronous>, transform_indices = @transform_2, window_bounds = array<i64: 1, 128>}, {pipeline_mode = #tpu.pipeline_mode<synchronous>, transform_indices = @transform_3, window_bounds = array<i64: 128, 128>}, {pipeline_mode = #tpu.pipeline_mode<synchronous>, transform_indices = @transform_4, window_bounds = array<i64: 1, 128>}, {pipeline_mode = #tpu.pipeline_mode<synchronous>, transform_indices = @transform_5, window_bounds = array<i64: 128, 128>}, {pipeline_mode = #tpu.pipeline_mode<synchronous>, transform_indices = @transform_6, window_bounds = array<i64: 1, 128>}, {pipeline_mode = #tpu.pipeline_mode<synchronous>, transform_indices = @transform_7, window_bounds = array<i64: 1, 128>}, {pipeline_mode = #tpu.pipeline_mode<synchronous>, transform_indices = @transform_8, window_bounds = array<i64: 1, 128>}, {transform_indices = @transform_9, window_bounds = array<i64: 8, 128>}]} {
    %c0 = arith.constant 0 : index
    %c0_0 = arith.constant 0 : index
    %0 = vector.load %arg1[%c0, %c0_0] : memref<8x32xbf16, #tpu.memory_space<vmem>>, vector<8x32xbf16>
    %c0_1 = arith.constant 0 : index
    %c0_2 = arith.constant 0 : index
    %1 = vector.load %arg2[%c0_1, %c0_2] : memref<32x128xbf16, #tpu.memory_space<vmem>>, vector<32x128xbf16>
    %cst = arith.constant dense<0.000000e+00> : vector<8x128xf32>
    %2 = tpu.matmul %0, %1, %cst {dimension_numbers = #tpu.dot_dimension_numbers<[1], [0], [0], [1], [0, 0, 1, 1], [], []>} : vector<8x32xbf16>, vector<32x128xbf16>, vector<8x128xf32> -> vector<8x128xf32>
    %c0_3 = arith.constant 0 : index
    %c0_4 = arith.constant 0 : index
    %3 = vector.load %arg3[%c0_3, %c0_4] : memref<1x128xf32, #tpu.memory_space<vmem>>, vector<1x128xf32>
    %4 = vector.broadcast %3 : vector<1x128xf32> to vector<8x128xf32>
    %5 = arith.addf %2, %4 : vector<8x128xf32>
    %cst_5 = arith.constant 0.000000e+00 : f32
    %6 = vector.broadcast %cst_5 : f32 to vector<8x128xf32>
    %7 = arith.cmpf ogt, %5, %6 : vector<8x128xf32>
    %8 = math.exp %5 : vector<8x128xf32>
    %cst_6 = arith.constant 1.000000e+00 : f32
    %9 = vector.broadcast %cst_6 : f32 to vector<8x128xf32>
    %10 = arith.subf %8, %9 : vector<8x128xf32>
    %11 = arith.select %7, %5, %10 : vector<8x128xi1>, vector<8x128xf32>
    %12 = arith.truncf %11 : vector<8x128xf32> to vector<8x128xbf16>
    %c0_7 = arith.constant 0 : index
    %c0_8 = arith.constant 0 : index
    %13 = vector.load %arg4[%c0_7, %c0_8] : memref<128x128xbf16, #tpu.memory_space<vmem>>, vector<128x128xbf16>
    %cst_9 = arith.constant dense<0.000000e+00> : vector<8x128xf32>
    %14 = tpu.matmul %12, %13, %cst_9 {dimension_numbers = #tpu.dot_dimension_numbers<[1], [0], [0], [1], [0, 0, 1, 1], [], []>} : vector<8x128xbf16>, vector<128x128xbf16>, vector<8x128xf32> -> vector<8x128xf32>
    %c0_10 = arith.constant 0 : index
    %c0_11 = arith.constant 0 : index
    %15 = vector.load %arg5[%c0_10, %c0_11] : memref<1x128xf32, #tpu.memory_space<vmem>>, vector<1x128xf32>
    %16 = vector.broadcast %15 : vector<1x128xf32> to vector<8x128xf32>
    %17 = arith.addf %14, %16 : vector<8x128xf32>
    %cst_12 = arith.constant 0.000000e+00 : f32
    %18 = vector.broadcast %cst_12 : f32 to vector<8x128xf32>
    %19 = arith.cmpf ogt, %17, %18 : vector<8x128xf32>
    %20 = math.exp %17 : vector<8x128xf32>
    %cst_13 = arith.constant 1.000000e+00 : f32
    %21 = vector.broadcast %cst_13 : f32 to vector<8x128xf32>
    %22 = arith.subf %20, %21 : vector<8x128xf32>
    %23 = arith.select %19, %17, %22 : vector<8x128xi1>, vector<8x128xf32>
    %c0_14 = arith.constant 0 : index
    %c0_15 = arith.constant 0 : index
    %24 = vector.load %arg6[%c0_14, %c0_15] : memref<128x128xf32, #tpu.memory_space<vmem>>, vector<128x128xf32>
    %cst_16 = arith.constant dense<0.000000e+00> : vector<8x128xf32>
    %25 = tpu.matmul %23, %24, %cst_16 {dimension_numbers = #tpu.dot_dimension_numbers<[1], [0], [0], [1], [0, 0, 1, 1], [], []>} : vector<8x128xf32>, vector<128x128xf32>, vector<8x128xf32> -> vector<8x128xf32>
    %c0_17 = arith.constant 0 : index
    %c0_18 = arith.constant 0 : index
    %26 = vector.load %arg7[%c0_17, %c0_18] : memref<1x128xf32, #tpu.memory_space<vmem>>, vector<1x128xf32>
    %27 = vector.broadcast %26 : vector<1x128xf32> to vector<8x128xf32>
    %28 = arith.addf %25, %27 : vector<8x128xf32>
    %c0_19 = arith.constant 0 : index
    %c0_20 = arith.constant 0 : index
    %29 = vector.load %arg8[%c0_19, %c0_20] : memref<1x128xf32, #tpu.memory_space<vmem>>, vector<1x128xf32>
    %30 = vector.broadcast %29 : vector<1x128xf32> to vector<8x128xf32>
    %31 = arith.addf %28, %30 : vector<8x128xf32>
    %cst_21 = arith.constant dense<0xFF800000> : vector<8xf32>
    %32 = vector.multi_reduction <maximumf>, %31, %cst_21 [1] : vector<8x128xf32> to vector<8xf32>
    %33 = vector.shape_cast %32 : vector<8xf32> to vector<8x1xf32>
    %34 = vector.broadcast %33 : vector<8x1xf32> to vector<8x128xf32>
    %35 = arith.subf %31, %34 : vector<8x128xf32>
    %36 = math.exp %35 : vector<8x128xf32>
    %cst_22 = arith.constant dense<0.000000e+00> : vector<8xf32>
    %37 = vector.multi_reduction <add>, %36, %cst_22 [1] : vector<8x128xf32> to vector<8xf32>
    %38 = vector.shape_cast %37 : vector<8xf32> to vector<8x1xf32>
    %39 = vector.broadcast %38 : vector<8x1xf32> to vector<8x128xf32>
    %40 = arith.divf %36, %39 : vector<8x128xf32>
    %c0_23 = arith.constant 0 : index
    %c0_24 = arith.constant 0 : index
    %41 = vector.load %arg9[%c0_23, %c0_24] : memref<1x128xf32, #tpu.memory_space<vmem>>, vector<1x128xf32>
    %42 = vector.broadcast %41 : vector<1x128xf32> to vector<8x128xf32>
    %43 = arith.mulf %28, %42 : vector<8x128xf32>
    %44 = arith.addf %40, %43 : vector<8x128xf32>
    %c0_25 = arith.constant 0 : index
    %c0_26 = arith.constant 0 : index
    %45 = vector.load %arg10[%c0_25, %c0_26] : memref<8x128xf32, #tpu.memory_space<vmem>>, vector<8x128xf32>
    tpu.vector_store %arg10[%c0_25, %c0_26], %44 {strides = array<i32>} : memref<8x128xf32, #tpu.memory_space<vmem>>, vector<8x128xf32>,
    return
  }
  func.func @transform_0(%arg0: i32) -> (i32, i32) {
    %c0_i32 = arith.constant 0 : i32
    %c0_i32_0 = arith.constant 0 : i32
    return %arg0, %c0_i32 : i32, i32
  }
  func.func @transform_1(%arg0: i32) -> (i32, i32) {
    %c0_i32 = arith.constant 0 : i32
    %c0_i32_0 = arith.constant 0 : i32
    %c0_i32_1 = arith.constant 0 : i32
    return %c0_i32, %c0_i32_0 : i32, i32
  }
  func.func @transform_2(%arg0: i32) -> (i32, i32) {
    %c0_i32 = arith.constant 0 : i32
    %c0_i32_0 = arith.constant 0 : i32
    %c0_i32_1 = arith.constant 0 : i32
    return %c0_i32, %c0_i32_0 : i32, i32
  }
  func.func @transform_3(%arg0: i32) -> (i32, i32) {
    %c0_i32 = arith.constant 0 : i32
    %c0_i32_0 = arith.constant 0 : i32
    %c0_i32_1 = arith.constant 0 : i32
    return %c0_i32, %c0_i32_0 : i32, i32
  }
  func.func @transform_4(%arg0: i32) -> (i32, i32) {
    %c0_i32 = arith.constant 0 : i32
    %c0_i32_0 = arith.constant 0 : i32
    %c0_i32_1 = arith.constant 0 : i32
    return %c0_i32, %c0_i32_0 : i32, i32
  }
  func.func @transform_5(%arg0: i32) -> (i32, i32) {
    %c0_i32 = arith.constant 0 : i32
    %c0_i32_0 = arith.constant 0 : i32
    %c0_i32_1 = arith.constant 0 : i32
    return %c0_i32, %c0_i32_0 : i32, i32
  }
  func.func @transform_6(%arg0: i32) -> (i32, i32) {
    %c0_i32 = arith.constant 0 : i32
    %c0_i32_0 = arith.constant 0 : i32
    %c0_i32_1 = arith.constant 0 : i32
    return %c0_i32, %c0_i32_0 : i32, i32
  }
  func.func @transform_7(%arg0: i32) -> (i32, i32) {
    %c0_i32 = arith.constant 0 : i32
    %c0_i32_0 = arith.constant 0 : i32
    %c0_i32_1 = arith.constant 0 : i32
    return %c0_i32, %c0_i32_0 : i32, i32
  }
  func.func @transform_8(%arg0: i32) -> (i32, i32) {
    %c0_i32 = arith.constant 0 : i32
    %c0_i32_0 = arith.constant 0 : i32
    %c0_i32_1 = arith.constant 0 : i32
    return %c0_i32, %c0_i32_0 : i32, i32
  }
  func.func @transform_9(%arg0: i32) -> (i32, i32) {
    %c0_i32 = arith.constant 0 : i32
    %c0_i32_0 = arith.constant 0 : i32
    return %arg0, %c0_i32 : i32, i32
  }
}

</mosaic_0001>

<llo_original>
// kernel: tpu_custom_call.1
$region0: #{tpu_custom_call.1}
  #allocation0 [shape = 'u32[]', space=smem, size = 0x4, offset = 0x4, fixed_abs, tag = 'smem constant byte address 0x4 - core index']
  #allocation1 [shape = 'u32[144,128]{1,0:T(1,128)}', space=vmem, size = 0x12000, scoped, tag = 'internal scratch']
  %s0 = inlined_call_operand.hbm [shape: bf16[8,32], index: 0, kind: input, shape index: {}]
  %s1 = inlined_call_operand.hbm [shape: bf16[32,128], index: 1, kind: input, shape index: {}]
  %s2 = inlined_call_operand.vmem [shape: f32[1,128], index: 2, kind: input, shape index: {}]
  %s3 = inlined_call_operand.hbm [shape: bf16[128,128], index: 3, kind: input, shape index: {}]
  %s4 = inlined_call_operand.vmem [shape: f32[1,128], index: 4, kind: input, shape index: {}]
  %s5 = inlined_call_operand.hbm [shape: f32[128,128], index: 5, kind: input, shape index: {}]
  %s6 = inlined_call_operand.vmem [shape: f32[1,128], index: 6, kind: input, shape index: {}]
  %s7 = inlined_call_operand.vmem [shape: f32[1,128], index: 7, kind: input, shape index: {}]
  %s8 = inlined_call_operand.vmem [shape: f32[1,128], index: 8, kind: input, shape index: {}]
  %s9 = inlined_call_operand.hbm [shape: f32[8,128], index: 9, kind: output, shape index: {}]
  %s10 = sld [smem:[#allocation0]]
  $region62: #{tpu_custom_call.1} parent=0
    _
  %s12 = ssub.s32 1, %s10
  %s13 = scalar_select 0, %s12, %s10
  $region1: #{tpu_custom_call.1} parent=0
    #allocation2 [shape = 'u8[2048]{0}', space=vmem, size = 0x800, scoped, tag = 'input window, operand 0, single buffered']
    #allocation3 [shape = 's32[1]{0}', space=sflag, size = 0x4, scoped, tag = 'scoped memory for tpu_custom_call.1']
    #allocation4 [shape = 's32[1]{0}', space=sflag, size = 0x4, scoped, tag = 'scoped memory for tpu_custom_call.1']
    #allocation5 [shape = 'u8[8192]{0}', space=vmem, size = 0x2000, scoped, tag = 'input window, operand 1, single buffered']
    #allocation6 [shape = 's32[1]{0}', space=sflag, size = 0x4, scoped, tag = 'scoped memory for tpu_custom_call.1']
    #allocation7 [shape = 'u8[32768]{0}', space=vmem, size = 0x8000, scoped, tag = 'input window, operand 3, single buffered']
    #allocation8 [shape = 'u8[65536]{0}', space=vmem, size = 0x10000, scoped, tag = 'input window, operand 5, single buffered']
    #allocation9 [shape = 's32[1]{0}', space=sflag, size = 0x4, scoped, tag = 'scoped memory for tpu_custom_call.1']
    #allocation10 [shape = 'u8[4096]{0}', space=vmem, size = 0x1000, scoped, tag = 'output window, operand 0, single buffered']
    %14 = vsyncpa [#allocation3], 0
    %15 = vsyncpa [#allocation6], 0
    %16 = vsyncpa [#allocation9], 0
    %17 = vsyncpa [#allocation4], 0
    // Predicated region
    $region2: #{tpu_custom_call.1} parent=1 // pred_check
      _
    $region3: #{tpu_custom_call.1} parent=1 // pred_check_branch
      %19 = sbr.rel (0) target = $region5
    $region4: #{tpu_custom_call.1} parent=1 // pred_region
      %s21 = ssub.s32 64, 64
      %22 = vsyncadd [#allocation3], %s21
      %s24 = sshll.u32 [#allocation2], 4
      %s25 = int_to_ptr.vmem [resolvable:$true] %s24
      %27 = dma.hbm_to_vmem [thread:$0]  %s0, 64, %s25, [#allocation3]
    $region5: #{tpu_custom_call.1} parent=1 // pred_fallthru
      _
    // Predicated region
    $region6: #{tpu_custom_call.1} parent=1 // pred_check
      _
    $region7: #{tpu_custom_call.1} parent=1 // pred_check_branch
      %29 = sbr.rel (0) target = $region9
    $region8: #{tpu_custom_call.1} parent=1 // pred_region
      %s31 = ssub.s32 256, 256
      %32 = vsyncadd [#allocation6], %s31
      %s33 = sshll.u32 [#allocation5], 4
      %s34 = int_to_ptr.vmem [resolvable:$true] %s33
      %39 = dma.hbm_to_vmem [thread:$0]  %s1, 256, %s34, [#allocation6], 64, 64, 4
    $region9: #{tpu_custom_call.1} parent=1 // pred_fallthru
      _
    // Predicated region
    $region10: #{tpu_custom_call.1} parent=1 // pred_check
      _
    $region11: #{tpu_custom_call.1} parent=1 // pred_check_branch
      %41 = sbr.rel (0) target = $region13
    $region12: #{tpu_custom_call.1} parent=1 // pred_region
      _
    $region13: #{tpu_custom_call.1} parent=1 // pred_fallthru
      _
    // Predicated region
    $region14: #{tpu_custom_call.1} parent=1 // pred_check
      _
    $region15: #{tpu_custom_call.1} parent=1 // pred_check_branch
      %43 = sbr.rel (0) target = $region17
    $region16: #{tpu_custom_call.1} parent=1 // pred_region
      %s45 = ssub.s32 1024, 1024
      %46 = vsyncadd [#allocation6], %s45
      %s47 = sshll.u32 [#allocation7], 4
      %s48 = int_to_ptr.vmem [resolvable:$true] %s47
      %53 = dma.hbm_to_vmem [thread:$0]  %s3, 1024, %s48, [#allocation6], 64, 64, 4
    $region17: #{tpu_custom_call.1} parent=1 // pred_fallthru
      _
    // Predicated region
    $region18: #{tpu_custom_call.1} parent=1 // pred_check
      _
    $region19: #{tpu_custom_call.1} parent=1 // pred_check_branch
      %55 = sbr.rel (0) target = $region21
    $region20: #{tpu_custom_call.1} parent=1 // pred_region
      _
    $region21: #{tpu_custom_call.1} parent=1 // pred_fallthru
      _
    // Predicated region
    $region22: #{tpu_custom_call.1} parent=1 // pred_check
      _
    $region23: #{tpu_custom_call.1} parent=1 // pred_check_branch
      %57 = sbr.rel (0) target = $region25
    $region24: #{tpu_custom_call.1} parent=1 // pred_region
      %s59 = ssub.s32 2048, 2048
      %60 = vsyncadd [#allocation9], %s59
      %s61 = sshll.u32 [#allocation8], 4
      %s62 = int_to_ptr.vmem [resolvable:$true] %s61
      %67 = dma.hbm_to_vmem [thread:$0]  %s5, 2048, %s62, [#allocation9], 128, 128, 8
    $region25: #{tpu_custom_call.1} parent=1 // pred_fallthru
      _
    // Predicated region
    $region26: #{tpu_custom_call.1} parent=1 // pred_check
      _
    $region27: #{tpu_custom_call.1} parent=1 // pred_check_branch
      %69 = sbr.rel (0) target = $region29
    $region28: #{tpu_custom_call.1} parent=1 // pred_region
      _
    $region29: #{tpu_custom_call.1} parent=1 // pred_fallthru
      _
    // Predicated region
    $region30: #{tpu_custom_call.1} parent=1 // pred_check
      _
    $region31: #{tpu_custom_call.1} parent=1 // pred_check_branch
      %71 = sbr.rel (0) target = $region33
    $region32: #{tpu_custom_call.1} parent=1 // pred_region
      _
    $region33: #{tpu_custom_call.1} parent=1 // pred_fallthru
      _
    // Predicated region
    $region34: #{tpu_custom_call.1} parent=1 // pred_check
      _
    $region35: #{tpu_custom_call.1} parent=1 // pred_check_branch
      %73 = sbr.rel (0) target = $region37
    $region36: #{tpu_custom_call.1} parent=1 // pred_region
      _
    $region37: #{tpu_custom_call.1} parent=1 // pred_fallthru
      _
    // Predicated region
    $region38: #{tpu_custom_call.1} parent=1 // pred_check
      _
    $region39: #{tpu_custom_call.1} parent=1 // pred_check_branch
      %75 = sbr.rel (0) target = $region41
    $region40: #{tpu_custom_call.1} parent=1 // pred_region
      %76 = dma.done [#allocation3], 64
    $region41: #{tpu_custom_call.1} parent=1 // pred_fallthru
      _
    // Predicated region
    $region42: #{tpu_custom_call.1} parent=1 // pred_check
      _
    $region43: #{tpu_custom_call.1} parent=1 // pred_check_branch
      %78 = sbr.rel (0) target = $region45
    $region44: #{tpu_custom_call.1} parent=1 // pred_region
      %79 = dma.done [#allocation6], 256
    $region45: #{tpu_custom_call.1} parent=1 // pred_fallthru
      _
    // Predicated region
    $region46: #{tpu_custom_call.1} parent=1 // pred_check
      _
    $region47: #{tpu_custom_call.1} parent=1 // pred_check_branch
      %81 = sbr.rel (0) target = $region49
    $region48: #{tpu_custom_call.1} parent=1 // pred_region
      %82 = dma.done [#allocation6], 1024
    $region49: #{tpu_custom_call.1} parent=1 // pred_fallthru
      _
    // Predicated region
    $region50: #{tpu_custom_call.1} parent=1 // pred_check
      _
    $region51: #{tpu_custom_call.1} parent=1 // pred_check_branch
      %84 = sbr.rel (0) target = $region53
    $region52: #{tpu_custom_call.1} parent=1 // pred_region
      %85 = dma.done [#allocation9], 2048
    $region53: #{tpu_custom_call.1} parent=1 // pred_fallthru
      _
    %v87 = vld [vmem:[#allocation2] sm:$0xf]
    %v88 = vld [vmem:[#allocation5] sm:$0xf]
    %v89 = vld [vmem:[#allocation5 + $0x4] sm:$0xf]
    %v90 = vld [vmem:[#allocation5 + $0x8] sm:$0xf]
    %v91 = vld [vmem:[#allocation5 + $0xc] sm:$0xf]
    %v92 = vld [vmem:[%s2] sm:$0x1]
    %v94 = vlaneseq
    %v95 = vshrl.u32 %v94, 7
    %v96 = vsub.s32 0, %v95
    %v97 = vrot.slane %v92, %v96
    %v103 = vunpack.c.l.b16 %v88
    %v104 = vunpack.c.l.b16 %v89
    %v105 = vunpack.c.l.b16 %v90
    %v106 = vunpack.c.l.b16 %v91
    %v107 = vpack.c.b16 %v104, %v103
    %v108 = vpack.c.b16 %v106, %v105
    %vm111 = vcmask 261120
    %v113 = vsel %vm111, %v87, 0
    %115 = vmatprep.subr.bf16.mxu0 0
    %116 = vmatpush1.bf16.msra.mxu0 %v107
    %117 = vmatprep.subr.bf16.mxu0 0
    %118 = vmatpush1.bf16.msra.mxu0 %v108
    %119 = vmatprep.subr.bf16.mxu0 0
    %120 = vmatpush1.bf16.msra.mxu0 0
    %121 = vmatprep.subr.bf16.mxu0 0
    %122 = vmatpush1.bf16.msra.mxu0 0
    %123 = vmatprep.subr.bf16.mxu0 0
    %124 = vmatpush1.bf16.msra.mxu0 0
    %125 = vmatprep.subr.bf16.mxu0 0
    %126 = vmatpush1.bf16.msra.mxu0 0
    %127 = vmatprep.subr.bf16.mxu0 0
    %128 = vmatpush1.bf16.msra.mxu0 0
    %129 = vmatprep.subr.bf16.mxu0 0
    %130 = vmatpush1.bf16.msra.mxu0 0
    %131 = vmatprep.subr.bf16.mxu0 0
    %132 = vmatpush1.bf16.msra.mxu0 0
    %133 = vmatprep.subr.bf16.mxu0 0
    %134 = vmatpush1.bf16.msra.mxu0 0
    %135 = vmatprep.subr.bf16.mxu0 0
    %136 = vmatpush1.bf16.msra.mxu0 0
    %137 = vmatprep.subr.bf16.mxu0 0
    %138 = vmatpush1.bf16.msra.mxu0 0
    %139 = vmatprep.subr.bf16.mxu0 0
    %140 = vmatpush1.bf16.msra.mxu0 0
    %141 = vmatprep.subr.bf16.mxu0 0
    %142 = vmatpush1.bf16.msra.mxu0 0
    %143 = vmatprep.subr.bf16.mxu0 0
    %144 = vmatpush1.bf16.msra.mxu0 0
    %145 = vmatprep.subr.bf16.mxu0 0
    %146 = vmatpush1.bf16.msra.mxu0 0
    %147 = vmatprep.mubr.bf16.mxu0 0
    %148 = vmatmul.mubr.bf16.gmra.mrb[0].mxu0 %v113
    %v149 = vpop.f32.mrb[0].mxu0
    %v150 = vadd.f32 %v97, %v149
    %v151 = vpop.f32.mrb[0].mxu0
    %v152 = vpop.f32.mrb[0].mxu0
    %v153 = vpop.f32.mrb[0].mxu0
    %154 = vdwg.mxu0
    %vm155 = vcmp.gt.f32.partialorder %v150, 0.0
    %v156 = vmul.f32 %v150, 1.442695
    %v157 = vpow.pop %v156
    %v158 = vsub.f32 %v157, 1.0
    %v159 = vsel %vm155, %v150, %v158
    %v160 = vpack.c.bf16 %v159, %v159
    %v161 = vld [vmem:[#allocation7] sm:$0xf]
    %v162 = vld [vmem:[#allocation7 + $0x4] sm:$0xf]
    %v163 = vld [vmem:[#allocation7 + $0x8] sm:$0xf]
    %v164 = vld [vmem:[#allocation7 + $0xc] sm:$0xf]
    %v165 = vld [vmem:[#allocation7 + $0x10] sm:$0xf]
    %v166 = vld [vmem:[#allocation7 + $0x14] sm:$0xf]
    %v167 = vld [vmem:[#allocation7 + $0x18] sm:$0xf]
    %v168 = vld [vmem:[#allocation7 + $0x1c] sm:$0xf]
    %v169 = vld [vmem:[#allocation7 + $0x20] sm:$0xf]
    %v170 = vld [vmem:[#allocation7 + $0x24] sm:$0xf]
    %v171 = vld [vmem:[#allocation7 + $0x28] sm:$0xf]
    %v172 = vld [vmem:[#allocation7 + $0x2c] sm:$0xf]
    %v173 = vld [vmem:[#allocation7 + $0x30] sm:$0xf]
    %v174 = vld [vmem:[#allocation7 + $0x34] sm:$0xf]
    %v175 = vld [vmem:[#allocation7 + $0x38] sm:$0xf]
    %v176 = vld [vmem:[#allocation7 + $0x3c] sm:$0xf]
    %v177 = vld [vmem:[%s4] sm:$0x1]
    %v179 = vlaneseq
    %v180 = vshrl.u32 %v179, 7
    %v181 = vsub.s32 0, %v180
    %v182 = vrot.slane %v177, %v181
    %v200 = vunpack.c.l.b16 %v161
    %v201 = vunpack.c.l.b16 %v162
    %v202 = vunpack.c.l.b16 %v163
    %v203 = vunpack.c.l.b16 %v164
    %v204 = vunpack.c.l.b16 %v165
    %v205 = vunpack.c.l.b16 %v166
    %v206 = vunpack.c.l.b16 %v167
    %v207 = vunpack.c.l.b16 %v168
    %v208 = vunpack.c.l.b16 %v169
    %v209 = vunpack.c.l.b16 %v170
    %v210 = vunpack.c.l.b16 %v171
    %v211 = vunpack.c.l.b16 %v172
    %v212 = vunpack.c.l.b16 %v173
    %v213 = vunpack.c.l.b16 %v174
    %v214 = vunpack.c.l.b16 %v175
    %v215 = vunpack.c.l.b16 %v176
    %v216 = vpack.c.b16 %v201, %v200
    %v217 = vpack.c.b16 %v203, %v202
    %v218 = vpack.c.b16 %v205, %v204
    %v219 = vpack.c.b16 %v207, %v206
    %v220 = vpack.c.b16 %v209, %v208
    %v221 = vpack.c.b16 %v211, %v210
    %v222 = vpack.c.b16 %v213, %v212
    %v223 = vpack.c.b16 %v215, %v214
    %232 = vmatprep.subr.bf16.mxu0 0
    %233 = vmatpush1.bf16.msra.mxu0 %v216
    %234 = vmatprep.subr.bf16.mxu0 0
    %235 = vmatpush1.bf16.msra.mxu0 %v217
    %236 = vmatprep.subr.bf16.mxu0 0
    %237 = vmatpush1.bf16.msra.mxu0 %v218
    %238 = vmatprep.subr.bf16.mxu0 0
    %239 = vmatpush1.bf16.msra.mxu0 %v219
    %240 = vmatprep.subr.bf16.mxu0 0
    %241 = vmatpush1.bf16.msra.mxu0 %v220
    %242 = vmatprep.subr.bf16.mxu0 0
    %243 = vmatpush1.bf16.msra.mxu0 %v221
    %244 = vmatprep.subr.bf16.mxu0 0
    %245 = vmatpush1.bf16.msra.mxu0 %v222
    %246 = vmatprep.subr.bf16.mxu0 0
    %247 = vmatpush1.bf16.msra.mxu0 %v223
    %248 = vmatprep.subr.bf16.mxu0 0
    %249 = vmatpush1.bf16.msra.mxu0 0
    %250 = vmatprep.subr.bf16.mxu0 0
    %251 = vmatpush1.bf16.msra.mxu0 0
    %252 = vmatprep.subr.bf16.mxu0 0
    %253 = vmatpush1.bf16.msra.mxu0 0
    %254 = vmatprep.subr.bf16.mxu0 0
    %255 = vmatpush1.bf16.msra.mxu0 0
    %256 = vmatprep.subr.bf16.mxu0 0
    %257 = vmatpush1.bf16.msra.mxu0 0
    %258 = vmatprep.subr.bf16.mxu0 0
    %259 = vmatpush1.bf16.msra.mxu0 0
    %260 = vmatprep.subr.bf16.mxu0 0
    %261 = vmatpush1.bf16.msra.mxu0 0
    %262 = vmatprep.subr.bf16.mxu0 0
    %263 = vmatpush1.bf16.msra.mxu0 0
    %264 = vmatprep.mubr.bf16.mxu0 0
    %265 = vmatmul.mubr.bf16.gmra.mrb[0].mxu0 %v160
    %v266 = vpop.f32.mrb[0].mxu0
    %v267 = vadd.f32 %v182, %v266
    %v268 = vpop.f32.mrb[0].mxu0
    %v269 = vpop.f32.mrb[0].mxu0
    %v270 = vpop.f32.mrb[0].mxu0
    %271 = vdwg.mxu0
    %vm272 = vcmp.gt.f32.partialorder %v267, 0.0
    %v273 = vmul.f32 %v267, 1.442695
    %v274 = vpow.pop %v273
    %v275 = vsub.f32 %v274, 1.0
    %v276 = vsel %vm272, %v267, %v275
    %v277 = vld [vmem:[#allocation8] sm:$0xff]
    %v278 = vld [vmem:[#allocation8 + $0x8] sm:$0xff]
    %v279 = vld [vmem:[#allocation8 + $0x10] sm:$0xff]
    %v280 = vld [vmem:[#allocation8 + $0x18] sm:$0xff]
    %v281 = vld [vmem:[#allocation8 + $0x20] sm:$0xff]
    %v282 = vld [vmem:[#allocation8 + $0x28] sm:$0xff]
    %v283 = vld [vmem:[#allocation8 + $0x30] sm:$0xff]
    %v284 = vld [vmem:[#allocation8 + $0x38] sm:$0xff]
    %v285 = vld [vmem:[#allocation8 + $0x40] sm:$0xff]
    %v286 = vld [vmem:[#allocation8 + $0x48] sm:$0xff]
    %v287 = vld [vmem:[#allocation8 + $0x50] sm:$0xff]
    %v288 = vld [vmem:[#allocation8 + $0x58] sm:$0xff]
    %v289 = vld [vmem:[#allocation8 + $0x60] sm:$0xff]
    %v290 = vld [vmem:[#allocation8 + $0x68] sm:$0xff]
    %v291 = vld [vmem:[#allocation8 + $0x70] sm:$0xff]
    %v292 = vld [vmem:[#allocation8 + $0x78] sm:$0xff]
    %v293 = vld [vmem:[%s6] sm:$0x1]
    %v295 = vlaneseq
    %v296 = vshrl.u32 %v295, 7
    %v297 = vsub.s32 0, %v296
    %v298 = vrot.slane %v293, %v297
    %300 = vmatprep.subr.mxu0 0.0
    %301 = vmatpush1.msra.mxu0 %v277
    %302 = vmatprep.subr.mxu0 0.0
    %303 = vmatpush1.msra.mxu0 %v278
    %304 = vmatprep.subr.mxu0 0.0
    %305 = vmatpush1.msra.mxu0 %v279
    %306 = vmatprep.subr.mxu0 0.0
    %307 = vmatpush1.msra.mxu0 %v280
    %308 = vmatprep.subr.mxu0 0.0
    %309 = vmatpush1.msra.mxu0 %v281
    %310 = vmatprep.subr.mxu0 0.0
    %311 = vmatpush1.msra.mxu0 %v282
    %312 = vmatprep.subr.mxu0 0.0
    %313 = vmatpush1.msra.mxu0 %v283
    %314 = vmatprep.subr.mxu0 0.0
    %315 = vmatpush1.msra.mxu0 %v284
    %316 = vmatprep.subr.mxu0 0.0
    %317 = vmatpush1.msra.mxu0 %v285
    %318 = vmatprep.subr.mxu0 0.0
    %319 = vmatpush1.msra.mxu0 %v286
    %320 = vmatprep.subr.mxu0 0.0
    %321 = vmatpush1.msra.mxu0 %v287
    %322 = vmatprep.subr.mxu0 0.0
    %323 = vmatpush1.msra.mxu0 %v288
    %324 = vmatprep.subr.mxu0 0.0
    %325 = vmatpush1.msra.mxu0 %v289
    %326 = vmatprep.subr.mxu0 0.0
    %327 = vmatpush1.msra.mxu0 %v290
    %328 = vmatprep.subr.mxu0 0.0
    %329 = vmatpush1.msra.mxu0 %v291
    %330 = vmatprep.subr.mxu0 0.0
    %331 = vmatpush1.msra.mxu0 %v292
    %332 = vmatprep.subr.mxu0 0.0
    %333 = vmatpush1.msra.mxu0 0.0
    %334 = vmatprep.subr.mxu0 0.0
    %335 = vmatpush1.msra.mxu0 0.0
    %336 = vmatprep.subr.mxu0 0.0
    %337 = vmatpush1.msra.mxu0 0.0
    %338 = vmatprep.subr.mxu0 0.0
    %339 = vmatpush1.msra.mxu0 0.0
    %340 = vmatprep.subr.mxu0 0.0
    %341 = vmatpush1.msra.mxu0 0.0
    %342 = vmatprep.subr.mxu0 0.0
    %343 = vmatpush1.msra.mxu0 0.0
    %344 = vmatprep.subr.mxu0 0.0
    %345 = vmatpush1.msra.mxu0 0.0
    %346 = vmatprep.subr.mxu0 0.0
    %347 = vmatpush1.msra.mxu0 0.0
    %348 = vmatprep.subr.mxu0 0.0
    %349 = vmatpush1.msra.mxu0 0.0
    %350 = vmatprep.subr.mxu0 0.0
    %351 = vmatpush1.msra.mxu0 0.0
    %352 = vmatprep.subr.mxu0 0.0
    %353 = vmatpush1.msra.mxu0 0.0
    %354 = vmatprep.subr.mxu0 0.0
    %355 = vmatpush1.msra.mxu0 0.0
    %356 = vmatprep.subr.mxu0 0.0
    %357 = vmatpush1.msra.mxu0 0.0
    %358 = vmatprep.subr.mxu0 0.0
    %359 = vmatpush1.msra.mxu0 0.0
    %360 = vmatprep.subr.mxu0 0.0
    %361 = vmatpush1.msra.mxu0 0.0
    %362 = vmatprep.subr.mxu0 0.0
    %363 = vmatpush1.msra.mxu0 0.0
    %364 = vmatprep.mubr.f32.mxu0 0.0
    %365 = vmatmul.mubr.f32.gmra.mrb[0].mxu0 %v276
    %v366 = vpop.f32.mrb[0].mxu0
    %v367 = vadd.f32 %v298, %v366
    %v368 = vpop.f32.mrb[0].mxu0
    %369 = vdwg.mxu0
    %v370 = vld [vmem:[%s7] sm:$0x1]
    %v372 = vlaneseq
    %v373 = vshrl.u32 %v372, 7
    %v374 = vsub.s32 0, %v373
    %v375 = vrot.slane %v370, %v374
    %v377 = vadd.f32 %v367, %v375
    %378 = vmax.xlane.f32.xlu0 %v377
    %v379 = vpop.xlane.xlu0 %378
    %v380 = vsub.f32 %v377, %v379
    %v381 = vmul.f32 %v380, 1.442695
    %v382 = vpow.pop %v381
    %383 = vadd.xlane.f32.xlu0 %v382
    %v384 = vpop.xlane.xlu0 %383
    %v385 = vrcp.pop %v384
    %v386 = vmul.f32 %v382, %v385
    %v387 = vld [vmem:[%s8] sm:$0x1]
    %v389 = vlaneseq
    %v390 = vshrl.u32 %v389, 7
    %v391 = vsub.s32 0, %v390
    %v392 = vrot.slane %v387, %v391
    %v394 = vmul.f32 %v367, %v392
    %v395 = vadd.f32 %v386, %v394
    %396 = vst [vmem:[#allocation10] sm:$0xff] %v395
    // Predicated region
    $region54: #{tpu_custom_call.1} parent=1 // pred_check
      _
    $region55: #{tpu_custom_call.1} parent=1 // pred_check_branch
      %398 = sbr.rel (0) target = $region57
    $region56: #{tpu_custom_call.1} parent=1 // pred_region
      %s400 = ssub.s32 128, 128
      %401 = vsyncadd [#allocation4], %s400
      %s403 = sshll.u32 [#allocation10], 4
      %s404 = int_to_ptr.vmem [resolvable:$true] %s403
      %406 = dma.vmem_to_hbm [thread:$0]  %s404, 128, %s9, [#allocation4]
    $region57: #{tpu_custom_call.1} parent=1 // pred_fallthru
      _
    // Predicated region
    $region58: #{tpu_custom_call.1} parent=1 // pred_check
      _
    $region59: #{tpu_custom_call.1} parent=1 // pred_check_branch
      %408 = sbr.rel (0) target = $region61
    $region60: #{tpu_custom_call.1} parent=1 // pred_region
      %409 = dma.done [#allocation4], 128
    $region61: #{tpu_custom_call.1} parent=1 // pred_fallthru
      _
    %410 = vsyncpa [#allocation3], 1
    %411 = vsyncpa [#allocation6], 1
    %412 = vsyncpa [#allocation9], 1
    %413 = vsyncpa [#allocation4], 1

</llo_original>
